<compile_context>
chip_gen: v7x
topology: tpu7x:2x2x1
jax: 0.10.0
libtpu: 0.0.40
codegen_flags: <defaults>
</compile_context>

<pallas_src>
import functools

import jax
import jax.numpy as jnp
from jax.experimental import pallas as pl
from jax.experimental.pallas import tpu as pltpu


def _round_up(v: int, m: int) -> int:
    return ((v + m - 1) // m) * m


def _vmem_capacity_bytes() -> int:
    """Physical VMEM of the current TPU generation (conservative fallback)."""
    try:
        info = pltpu.get_tpu_info()
        cap = int(getattr(info, "vmem_capacity_bytes", 0))
        if cap > 0:
            return cap
    except Exception:
        pass
    return 64 * 1024 * 1024  # v7x per-TC VMEM: safest assumption


def _default_tiles(compute_dtype, vmem_cap):
    """Generation-aware output tiles: spend VMEM on tm/tn (AI ~ tm*tn/(tm+tn)),
    keep tk moderate (AI does not depend on tk, input-buffer bytes do)."""
    sb = jnp.dtype(compute_dtype).itemsize
    if vmem_cap >= 96 * 1024 * 1024:
        # v5e / v6e: 128 MiB physical VMEM.
        return 1024, 1024, 512
    # v7x: 64 MiB per-TC VMEM -> smaller footprint, shorter tk.
    if sb <= 2:
        return 1024, 1024, 256
    return 512, 1024, 512


def _vmem_limit_bytes(tm, tn, tk, stream_bytes, has_bias, vmem_cap):
    need = (2 * tm * tk * stream_bytes        # double-buffered x tile
            + 2 * tk * tn * stream_bytes      # double-buffered exp(mu*W^T) tile
            + 2 * tm * tn * 4)                # double-buffered f32 output block
    if has_bias:
        need += 2 * tn * 4
    limit = max(need + (8 << 20), 32 << 20)   # headroom for internal scratch
    return int(min(limit, int(vmem_cap * 0.625)))


def _matmul_accumulate(x_ref, a_ref, o_ref):
    """Zero the resident output block on k==0, then o += x_tile @ a_tile."""

    @pl.when(pl.program_id(2) == 0)
    def _():
        o_ref[...] = jnp.zeros_like(o_ref)

    o_ref[...] += jnp.dot(x_ref[...], a_ref[...],
                          preferred_element_type=jnp.float32)  # MXU


def _logplusmp_kernel_bias(scal_ref, x_ref, a_ref, b_ref, o_ref):
    _matmul_accumulate(x_ref, a_ref, o_ref)

    @pl.when(pl.program_id(2) == pl.num_programs(2) - 1)
    def _():
        o_ref[...] = jnp.log(o_ref[...]) * scal_ref[0] + b_ref[...]


def _logplusmp_kernel_nobias(scal_ref, x_ref, a_ref, o_ref):
    _matmul_accumulate(x_ref, a_ref, o_ref)

    @pl.when(pl.program_id(2) == pl.num_programs(2) - 1)
    def _():
        o_ref[...] = jnp.log(o_ref[...]) * scal_ref[0]


def logplusmp_pallas(x, weight, mu, bias=None, *,
                     tm=None, tn=None, tk=None, compute_dtype=jnp.float32):
    """x: (..., in_features), weight: (out_features, in_features),
    mu: scalar array (shape (1,) or ()), bias: (out_features,) or None."""
    prefix_shape = x.shape[:-1]
    k_dim = x.shape[-1]
    n_dim = weight.shape[0]

    x2d = jnp.reshape(x, (-1, k_dim)).astype(jnp.float32)
    m_dim = x2d.shape[0]

    mu_f = jnp.reshape(mu, ()).astype(jnp.float32)
    inv_mu = jnp.reshape(1.0 / mu_f, (1,))                      # (1,) -> SMEM

    # Hoist BOTH exponentials out of the kernel (one fused XLA pass each,
    # fuses with padding/cast under jit). Inside the kernel the EUP only does
    # the final log, so the MXU path is not throttled by redundant exps.
    # TODO(synk): cache exp(mu * W^T) across calls when weight/mu are static.
    ex = jnp.exp(mu_f * x2d)                                          # (M, K)
    ea = jnp.exp(mu_f * jnp.transpose(weight.astype(jnp.float32)))    # (K, N)

    stream_dtype = jnp.dtype(compute_dtype)
    if stream_dtype != jnp.dtype(jnp.float32):
        # Cast the streamed (re-read) operands once in the wrapper; halves the
        # HBM DMA bytes and unlocks the bf16 MXU path. Accumulation stays f32.
        ex = ex.astype(stream_dtype)
        ea = ea.astype(stream_dtype)
    sb = stream_dtype.itemsize

    vmem_cap = _vmem_capacity_bytes()
    dtm, dtn, dtk = _default_tiles(compute_dtype, vmem_cap)
    tm = dtm if tm is None else tm
    tn = dtn if tn is None else tn
    tk = dtk if tk is None else tk

    # Clamp tile sizes to the aligned problem, then pad arrays to multiples.
    tm = min(tm, _round_up(max(m_dim, 1), 8))
    tn = min(tn, _round_up(max(n_dim, 1), 128))
    tk = min(tk, _round_up(max(k_dim, 1), 128))
    mp = _round_up(m_dim, tm)
    np_ = _round_up(n_dim, tn)
    kp = _round_up(k_dim, tk)

    # Padded K rows/cols are zero => padded-K terms contribute 0 to the sum.
    x_p = jnp.pad(ex, ((0, mp - m_dim), (0, kp - k_dim)))
    a_p = jnp.pad(ea, ((0, kp - k_dim), (0, np_ - n_dim)))

    grid = (mp // tm, np_ // tn, kp // tk)
    n_i, n_j, _ = grid

    scal_spec = pl.BlockSpec((1,), lambda i, j, k: (0,),
                             memory_space=pltpu.MemorySpace.SMEM)
    x_spec = pl.BlockSpec((tm, tk), lambda i, j, k: (i, k))
    a_spec = pl.BlockSpec((tk, tn), lambda i, j, k: (k, j))
    o_spec = pl.BlockSpec((tm, tn), lambda i, j, k: (i, j))

    has_bias = bias is not None
    cost = pl.CostEstimate(
        flops=2 * mp * np_ * kp,
        transcendentals=mp * np_,                     # only the final log
        bytes_accessed=(mp * kp * sb * n_j            # x stream re-read per N tile
                        + kp * np_ * sb * n_i         # a stream re-read per M tile
                        + mp * np_ * 4                # output write
                        + (np_ * 4 * n_i if has_bias else 0)
                        + 4),
    )
    compiler_params = pltpu.CompilerParams(
        dimension_semantics=("parallel", "parallel", "arbitrary"),
        vmem_limit_bytes=_vmem_limit_bytes(tm, tn, tk, sb, has_bias, vmem_cap),
    )

    if has_bias:
        b2d = jnp.pad(jnp.reshape(bias.astype(jnp.float32), (1, n_dim)),
                      ((0, 0), (0, np_ - n_dim)))
        kernel = _logplusmp_kernel_bias
        in_specs = [scal_spec, x_spec, a_spec,
                    pl.BlockSpec((1, tn), lambda i, j, k: (0, j))]
        args = (inv_mu, x_p, a_p, b2d)
    else:
        kernel = _logplusmp_kernel_nobias
        in_specs = [scal_spec, x_spec, a_spec]
        args = (inv_mu, x_p, a_p)

    out = pl.pallas_call(
        kernel,
        out_shape=jax.ShapeDtypeStruct((mp, np_), jnp.float32),
        grid_spec=pltpu.PrefetchScalarGridSpec(
            num_scalar_prefetch=0,
            grid=grid,
            in_specs=in_specs,
            out_specs=o_spec,
        ),
        compiler_params=compiler_params,
        cost_estimate=cost,
    )(*args)

    out = out[:m_dim, :n_dim]
    return jnp.reshape(out, (*prefix_shape, n_dim))


def _reference(x, weight, mu, bias):
    x2d = jnp.reshape(x, (-1, x.shape[-1]))
    ex = jnp.exp(mu * x2d)
    ea = jnp.exp(mu * weight)
    v = ex @ ea.T
    y = jnp.log(v) / mu
    if bias is not None:
        y = y + bias
    return jnp.reshape(y, (*x.shape[:-1], weight.shape[0]))


# TODO(synk): backward pass / checkpoint recompute (torch.utils.checkpoint,
# requires_grad) is training-only machinery; only the forward is implemented.

if __name__ == "__main__":
    # Small shapes implied by the Linear-like module: batch=2, seq=8, hidden=32.
    batch, seq, in_features, out_features = 2, 8, 32, 32
    mu_val = 1.0

    key = jax.random.PRNGKey(0)
    kx, kw, kb = jax.random.split(key, 3)

    # Deterministic parameter init (kaiming-uniform-like bounds).
    bound_w = (6.0 / in_features) ** 0.5 / (1.0 + 5.0) ** 0.5
    weight = jax.random.uniform(kw, (out_features, in_features),
                                jnp.float32, -bound_w, bound_w)
    bound_b = 1.0 / (in_features ** 0.5)
    bias = jax.random.uniform(kb, (out_features,),
                              jnp.float32, -bound_b, bound_b)
    mu = jnp.array([mu_val], jnp.float32)

    x = jax.random.normal(kx, (batch, seq, in_features), jnp.float32)

    # With-bias path.
    y = logplusmp_pallas(x, weight, mu, bias)
    y = jax.block_until_ready(y)
    y_ref = _reference(x, weight, mu[0], bias)
    assert y.shape == (batch, seq, out_features)
    assert jnp.allclose(y, y_ref, atol=1e-4, rtol=1e-4), "mismatch (bias)"

    # No-bias path (separate kernel variant).
    y0 = logplusmp_pallas(x, weight, mu, None)
    y0 = jax.block_until_ready(y0)
    y0_ref = _reference(x, weight, mu[0], None)
    assert jnp.allclose(y0, y0_ref, atol=1e-4, rtol=1e-4), "mismatch (no bias)"

    print("KERNEL_OK")
</pallas_src>

<mosaic_0001>
module attributes {stable_mosaic.version = 11 : i64} {
  func.func @_logplusmp_kernel_bias(%arg0: i32, %arg1: i32, %arg2: i32, %arg3: memref<1xf32, #tpu.memory_space<smem>>, %arg4: memref<16x128xf32, #tpu.memory_space<vmem>>, %arg5: memref<128x128xf32, #tpu.memory_space<vmem>>, %arg6: memref<1x128xf32, #tpu.memory_space<vmem>>, %arg7: memref<16x128xf32, #tpu.memory_space<vmem>>) attributes {dimension_semantics = [#tpu.dimension_semantics<parallel>, #tpu.dimension_semantics<parallel>, #tpu.dimension_semantics<arbitrary>], iteration_bounds = array<i64: 1, 1, 1>, scalar_prefetch = 0 : i64, scratch_operands = 0 : i64, tpu.core_type = #tpu.core_type<tc>, window_params = [{transform_indices = @transform_0, window_bounds = array<i64: 1>}, {transform_indices = @transform_1, window_bounds = array<i64: 16, 128>}, {transform_indices = @transform_2, window_bounds = array<i64: 128, 128>}, {transform_indices = @transform_3, window_bounds = array<i64: 1, 128>}, {transform_indices = @transform_4, window_bounds = array<i64: 16, 128>}]} {
    %c0_i32 = arith.constant 0 : i32
    %0 = arith.cmpi eq, %arg2, %c0_i32 : i32
    %1 = arith.extui %0 : i1 to i32
    %c0_i32_0 = arith.constant 0 : i32
    %2 = arith.cmpi ne, %1, %c0_i32_0 : i32
    scf.if %2 {
      %cst_10 = arith.constant 0.000000e+00 : f32
      %12 = vector.broadcast %cst_10 : f32 to vector<16x128xf32>
      %c0_11 = arith.constant 0 : index
      %c0_12 = arith.constant 0 : index
      %13 = vector.load %arg7[%c0_11, %c0_12] : memref<16x128xf32, #tpu.memory_space<vmem>>, vector<16x128xf32>
      tpu.vector_store %arg7[%c0_11, %c0_12], %12 {strides = array<i32>} : memref<16x128xf32, #tpu.memory_space<vmem>>, vector<16x128xf32>,
    } else {
    }
    %c0 = arith.constant 0 : index
    %c0_1 = arith.constant 0 : index
    %3 = vector.load %arg7[%c0, %c0_1] : memref<16x128xf32, #tpu.memory_space<vmem>>, vector<16x128xf32>
    %c0_2 = arith.constant 0 : index
    %c0_3 = arith.constant 0 : index
    %4 = vector.load %arg4[%c0_2, %c0_3] : memref<16x128xf32, #tpu.memory_space<vmem>>, vector<16x128xf32>
    %c0_4 = arith.constant 0 : index
    %c0_5 = arith.constant 0 : index
    %5 = vector.load %arg5[%c0_4, %c0_5] : memref<128x128xf32, #tpu.memory_space<vmem>>, vector<128x128xf32>
    %cst = arith.constant dense<0.000000e+00> : vector<16x128xf32>
    %6 = tpu.matmul %4, %5, %cst {dimension_numbers = #tpu.dot_dimension_numbers<[1], [0], [0], [1], [0, 0, 1, 1], [], []>} : vector<16x128xf32>, vector<128x128xf32>, vector<16x128xf32> -> vector<16x128xf32>
    %7 = arith.addf %3, %6 : vector<16x128xf32>
    %c0_6 = arith.constant 0 : index
    %c0_7 = arith.constant 0 : index
    %8 = vector.load %arg7[%c0_6, %c0_7] : memref<16x128xf32, #tpu.memory_space<vmem>>, vector<16x128xf32>
    tpu.vector_store %arg7[%c0_6, %c0_7], %7 {strides = array<i32>} : memref<16x128xf32, #tpu.memory_space<vmem>>, vector<16x128xf32>,
    %c0_i32_8 = arith.constant 0 : i32
    %9 = arith.cmpi eq, %arg2, %c0_i32_8 : i32
    %10 = arith.extui %9 : i1 to i32
    %c0_i32_9 = arith.constant 0 : i32
    %11 = arith.cmpi ne, %10, %c0_i32_9 : i32
    scf.if %11 {
      %c0_10 = arith.constant 0 : index
      %c0_11 = arith.constant 0 : index
      %12 = vector.load %arg7[%c0_10, %c0_11] : memref<16x128xf32, #tpu.memory_space<vmem>>, vector<16x128xf32>
      %13 = math.log %12 : vector<16x128xf32>
      %c0_12 = arith.constant 0 : index
      %14 = memref.load %arg3[%c0_12] : memref<1xf32, #tpu.memory_space<smem>>
      %15 = vector.broadcast %14 : f32 to vector<16x128xf32>
      %16 = arith.mulf %13, %15 : vector<16x128xf32>
      %c0_13 = arith.constant 0 : index
      %c0_14 = arith.constant 0 : index
      %17 = vector.load %arg6[%c0_13, %c0_14] : memref<1x128xf32, #tpu.memory_space<vmem>>, vector<1x128xf32>
      %18 = vector.broadcast %17 : vector<1x128xf32> to vector<16x128xf32>
      %19 = arith.addf %16, %18 : vector<16x128xf32>
      %c0_15 = arith.constant 0 : index
      %c0_16 = arith.constant 0 : index
      %20 = vector.load %arg7[%c0_15, %c0_16] : memref<16x128xf32, #tpu.memory_space<vmem>>, vector<16x128xf32>
      tpu.vector_store %arg7[%c0_15, %c0_16], %19 {strides = array<i32>} : memref<16x128xf32, #tpu.memory_space<vmem>>, vector<16x128xf32>,
    } else {
    }
    return
  }
  func.func @transform_0(%arg0: i32, %arg1: i32, %arg2: i32) -> i32 {
    %c0_i32 = arith.constant 0 : i32
    %c0_i32_0 = arith.constant 0 : i32
    return %c0_i32 : i32
  }
  func.func @transform_1(%arg0: i32, %arg1: i32, %arg2: i32) -> (i32, i32) {
    %c0_i32 = arith.constant 0 : i32
    return %arg0, %arg2 : i32, i32
  }
  func.func @transform_2(%arg0: i32, %arg1: i32, %arg2: i32) -> (i32, i32) {
    %c0_i32 = arith.constant 0 : i32
    return %arg2, %arg1 : i32, i32
  }
  func.func @transform_3(%arg0: i32, %arg1: i32, %arg2: i32) -> (i32, i32) {
    %c0_i32 = arith.constant 0 : i32
    %c0_i32_0 = arith.constant 0 : i32
    return %c0_i32, %arg1 : i32, i32
  }
  func.func @transform_4(%arg0: i32, %arg1: i32, %arg2: i32) -> (i32, i32) {
    %c0_i32 = arith.constant 0 : i32
    return %arg0, %arg1 : i32, i32
  }
}

</mosaic_0001>

<llo_original>
// kernel: tpu_custom_call.1
$region0: #{tpu_custom_call.1}
  #allocation0 [shape = 'u32[]', space=smem, size = 0x4, offset = 0x4, fixed_abs, tag = 'smem constant byte address 0x4 - core index']
  #allocation1 [shape = 'u32[144,128]{1,0:T(1,128)}', space=vmem, size = 0x12000, scoped, tag = 'internal scratch']
  #allocation2 [shape = 'f32[1]{0:T(128)S(6)}', space=smem, size = 0x200, scoped, tag = 'scoped memory for tpu_custom_call.1']
  %s0 = inlined_call_operand.<no memory space> [shape: f32[1], index: 0, kind: input, shape index: {}]
  %s1 = inlined_call_operand.hbm [shape: f32[16,128], index: 1, kind: input, shape index: {}]
  %s2 = inlined_call_operand.hbm [shape: f32[128,128], index: 2, kind: input, shape index: {}]
  %s3 = inlined_call_operand.vmem [shape: f32[1,128], index: 3, kind: input, shape index: {}]
  %s4 = inlined_call_operand.hbm [shape: f32[16,128], index: 4, kind: output, shape index: {}]
  %s5 = sld [smem:[#allocation0]]
  $region42: #{tpu_custom_call.1} parent=0
    _
  %s7 = ssub.s32 1, %s5
  %s8 = scalar_select 0, %s7, %s5
  %9 = sst [smem:[#allocation2]] %s0
  $region1: #{tpu_custom_call.1} parent=0
    #allocation3 [shape = 'u8[8192]{0}', space=vmem, size = 0x2000, scoped, tag = 'input window, operand 1, single buffered']
    #allocation4 [shape = 's32[1]{0}', space=sflag, size = 0x4, scoped, tag = 'scoped memory for tpu_custom_call.1']
    #allocation5 [shape = 's32[1]{0}', space=sflag, size = 0x4, scoped, tag = 'scoped memory for tpu_custom_call.1']
    #allocation6 [shape = 'u8[65536]{0}', space=vmem, size = 0x10000, scoped, tag = 'input window, operand 2, single buffered']
    #allocation7 [shape = 's32[1]{0}', space=sflag, size = 0x4, scoped, tag = 'scoped memory for tpu_custom_call.1']
    #allocation8 [shape = 'u8[8192]{0}', space=vmem, size = 0x2000, scoped, tag = 'output window, operand 0, single buffered']
    %10 = vsyncpa [#allocation4], 0
    %11 = vsyncpa [#allocation7], 0
    %12 = vsyncpa [#allocation5], 0
    // Predicated region
    $region2: #{tpu_custom_call.1} parent=1 // pred_check
      _
    $region3: #{tpu_custom_call.1} parent=1 // pred_check_branch
      %14 = sbr.rel (0) target = $region5
    $region4: #{tpu_custom_call.1} parent=1 // pred_region
      _
    $region5: #{tpu_custom_call.1} parent=1 // pred_fallthru
      _
    // Predicated region
    $region6: #{tpu_custom_call.1} parent=1 // pred_check
      _
    $region7: #{tpu_custom_call.1} parent=1 // pred_check_branch
      %16 = sbr.rel (0) target = $region9
    $region8: #{tpu_custom_call.1} parent=1 // pred_region
      %s18 = ssub.s32 256, 256
      %19 = vsyncadd [#allocation4], %s18
      %s20 = sshll.u32 [#allocation3], 4
      %s21 = int_to_ptr.vmem [resolvable:$true] %s20
      %26 = dma.hbm_to_vmem [thread:$0]  %s1, 256, %s21, [#allocation4], 128, 128, 8
    $region9: #{tpu_custom_call.1} parent=1 // pred_fallthru
      _
    // Predicated region
    $region10: #{tpu_custom_call.1} parent=1 // pred_check
      _
    $region11: #{tpu_custom_call.1} parent=1 // pred_check_branch
      %28 = sbr.rel (0) target = $region13
    $region12: #{tpu_custom_call.1} parent=1 // pred_region
      %s30 = ssub.s32 2048, 2048
      %31 = vsyncadd [#allocation7], %s30
      %s32 = sshll.u32 [#allocation6], 4
      %s33 = int_to_ptr.vmem [resolvable:$true] %s32
      %38 = dma.hbm_to_vmem [thread:$0]  %s2, 2048, %s33, [#allocation7], 128, 128, 8
    $region13: #{tpu_custom_call.1} parent=1 // pred_fallthru
      _
    // Predicated region
    $region14: #{tpu_custom_call.1} parent=1 // pred_check
      _
    $region15: #{tpu_custom_call.1} parent=1 // pred_check_branch
      %40 = sbr.rel (0) target = $region17
    $region16: #{tpu_custom_call.1} parent=1 // pred_region
      _
    $region17: #{tpu_custom_call.1} parent=1 // pred_fallthru
      _
    // Predicated region
    $region18: #{tpu_custom_call.1} parent=1 // pred_check
      _
    $region19: #{tpu_custom_call.1} parent=1 // pred_check_branch
      %42 = sbr.rel (0) target = $region21
    $region20: #{tpu_custom_call.1} parent=1 // pred_region
      %43 = dma.done [#allocation4], 256
    $region21: #{tpu_custom_call.1} parent=1 // pred_fallthru
      _
    // Predicated region
    $region22: #{tpu_custom_call.1} parent=1 // pred_check
      _
    $region23: #{tpu_custom_call.1} parent=1 // pred_check_branch
      %45 = sbr.rel (0) target = $region25
    $region24: #{tpu_custom_call.1} parent=1 // pred_region
      %46 = dma.done [#allocation7], 2048
    $region25: #{tpu_custom_call.1} parent=1 // pred_fallthru
      _
    %p47 = scmp.eq.s32.totalorder 0, 0
    // Predicated region
    $region26: #{tpu_custom_call.1} parent=1 // pred_check
      %p48 = pneg %p47
    $region27: #{tpu_custom_call.1} parent=1 // pred_check_branch
      %50 = sbr.rel (%p48) target = $region29
    $region28: #{tpu_custom_call.1} parent=1 // pred_region
      %51 = vst [vmem:[#allocation8] sm:$0xff] 0.0
      %52 = vst [vmem:[#allocation8 + $0x8] sm:$0xff] 0.0
    $region29: #{tpu_custom_call.1} parent=1 // pred_fallthru
      _
    %v53 = vld [vmem:[#allocation8] sm:$0xff]
    %v54 = vld [vmem:[#allocation8 + $0x8] sm:$0xff]
    %v55 = vld [vmem:[#allocation3] sm:$0xff]
    %v56 = vld [vmem:[#allocation3 + $0x8] sm:$0xff]
    %v57 = vld [vmem:[#allocation6] sm:$0xff]
    %v58 = vld [vmem:[#allocation6 + $0x8] sm:$0xff]
    %v59 = vld [vmem:[#allocation6 + $0x10] sm:$0xff]
    %v60 = vld [vmem:[#allocation6 + $0x18] sm:$0xff]
    %v61 = vld [vmem:[#allocation6 + $0x20] sm:$0xff]
    %v62 = vld [vmem:[#allocation6 + $0x28] sm:$0xff]
    %v63 = vld [vmem:[#allocation6 + $0x30] sm:$0xff]
    %v64 = vld [vmem:[#allocation6 + $0x38] sm:$0xff]
    %v65 = vld [vmem:[#allocation6 + $0x40] sm:$0xff]
    %v66 = vld [vmem:[#allocation6 + $0x48] sm:$0xff]
    %v67 = vld [vmem:[#allocation6 + $0x50] sm:$0xff]
    %v68 = vld [vmem:[#allocation6 + $0x58] sm:$0xff]
    %v69 = vld [vmem:[#allocation6 + $0x60] sm:$0xff]
    %v70 = vld [vmem:[#allocation6 + $0x68] sm:$0xff]
    %v71 = vld [vmem:[#allocation6 + $0x70] sm:$0xff]
    %v72 = vld [vmem:[#allocation6 + $0x78] sm:$0xff]
    %73 = vmatprep.subr.mxu0 0.0
    %74 = vmatpush1.msra.mxu0 %v57
    %75 = vmatprep.subr.mxu0 0.0
    %76 = vmatpush1.msra.mxu0 %v58
    %77 = vmatprep.subr.mxu0 0.0
    %78 = vmatpush1.msra.mxu0 %v59
    %79 = vmatprep.subr.mxu0 0.0
    %80 = vmatpush1.msra.mxu0 %v60
    %81 = vmatprep.subr.mxu0 0.0
    %82 = vmatpush1.msra.mxu0 %v61
    %83 = vmatprep.subr.mxu0 0.0
    %84 = vmatpush1.msra.mxu0 %v62
    %85 = vmatprep.subr.mxu0 0.0
    %86 = vmatpush1.msra.mxu0 %v63
    %87 = vmatprep.subr.mxu0 0.0
    %88 = vmatpush1.msra.mxu0 %v64
    %89 = vmatprep.subr.mxu0 0.0
    %90 = vmatpush1.msra.mxu0 %v65
    %91 = vmatprep.subr.mxu0 0.0
    %92 = vmatpush1.msra.mxu0 %v66
    %93 = vmatprep.subr.mxu0 0.0
    %94 = vmatpush1.msra.mxu0 %v67
    %95 = vmatprep.subr.mxu0 0.0
    %96 = vmatpush1.msra.mxu0 %v68
    %97 = vmatprep.subr.mxu0 0.0
    %98 = vmatpush1.msra.mxu0 %v69
    %99 = vmatprep.subr.mxu0 0.0
    %100 = vmatpush1.msra.mxu0 %v70
    %101 = vmatprep.subr.mxu0 0.0
    %102 = vmatpush1.msra.mxu0 %v71
    %103 = vmatprep.subr.mxu0 0.0
    %104 = vmatpush1.msra.mxu0 %v72
    %105 = vmatprep.subr.mxu0 0.0
    %106 = vmatpush1.msra.mxu0 0.0
    %107 = vmatprep.subr.mxu0 0.0
    %108 = vmatpush1.msra.mxu0 0.0
    %109 = vmatprep.subr.mxu0 0.0
    %110 = vmatpush1.msra.mxu0 0.0
    %111 = vmatprep.subr.mxu0 0.0
    %112 = vmatpush1.msra.mxu0 0.0
    %113 = vmatprep.subr.mxu0 0.0
    %114 = vmatpush1.msra.mxu0 0.0
    %115 = vmatprep.subr.mxu0 0.0
    %116 = vmatpush1.msra.mxu0 0.0
    %117 = vmatprep.subr.mxu0 0.0
    %118 = vmatpush1.msra.mxu0 0.0
    %119 = vmatprep.subr.mxu0 0.0
    %120 = vmatpush1.msra.mxu0 0.0
    %121 = vmatprep.subr.mxu0 0.0
    %122 = vmatpush1.msra.mxu0 0.0
    %123 = vmatprep.subr.mxu0 0.0
    %124 = vmatpush1.msra.mxu0 0.0
    %125 = vmatprep.subr.mxu0 0.0
    %126 = vmatpush1.msra.mxu0 0.0
    %127 = vmatprep.subr.mxu0 0.0
    %128 = vmatpush1.msra.mxu0 0.0
    %129 = vmatprep.subr.mxu0 0.0
    %130 = vmatpush1.msra.mxu0 0.0
    %131 = vmatprep.subr.mxu0 0.0
    %132 = vmatpush1.msra.mxu0 0.0
    %133 = vmatprep.subr.mxu0 0.0
    %134 = vmatpush1.msra.mxu0 0.0
    %135 = vmatprep.subr.mxu0 0.0
    %136 = vmatpush1.msra.mxu0 0.0
    %137 = vmatprep.mubr.f32.mxu0 0.0
    %138 = vmatmul.mubr.f32.gmra.mrb[0].mxu0 %v55
    %v139 = vpop.f32.mrb[0].mxu0
    %v140 = vadd.f32 0.0, %v139
    %v141 = vpop.f32.mrb[0].mxu0
    %142 = vmatprep.mubr.f32.mxu0 0.0
    %143 = vmatmul.mubr.f32.gmra.mrb[0].mxu0 %v56
    %v144 = vpop.f32.mrb[0].mxu0
    %v145 = vadd.f32 0.0, %v144
    %v146 = vpop.f32.mrb[0].mxu0
    %147 = vdwg.mxu0
    %v148 = vadd.f32 %v53, %v140
    %v149 = vadd.f32 %v54, %v145
    %150 = vst [vmem:[#allocation8] sm:$0xff] %v148
    %151 = vst [vmem:[#allocation8 + $0x8] sm:$0xff] %v149
    // Predicated region
    $region30: #{tpu_custom_call.1} parent=1 // pred_check
      %p152 = pneg %p47
    $region31: #{tpu_custom_call.1} parent=1 // pred_check_branch
      %154 = sbr.rel (%p152) target = $region33
    $region32: #{tpu_custom_call.1} parent=1 // pred_region
      %v155 = vld [vmem:[#allocation8] sm:$0xff]
      %v156 = vld [vmem:[#allocation8 + $0x8] sm:$0xff]
      %v157 = vlog2.pop %v155
      %v158 = vmul.f32 %v157, 0.6931472
      %v159 = vlog2.pop %v156
      %v160 = vmul.f32 %v159, 0.6931472
      %s161 = sld [smem:[#allocation2]]
      %v162 = vstv %s161
      %v163 = vmul.f32 %v158, %v162
      %v164 = vmul.f32 %v160, %v162
      %v165 = vld [vmem:[%s3] sm:$0x1]
      %v167 = vlaneseq
      %v168 = vshrl.u32 %v167, 7
      %v169 = vsub.s32 0, %v168
      %v170 = vrot.slane %v165, %v169
      %v172 = vadd.f32 %v163, %v170
      %v173 = vadd.f32 %v164, %v170
      %174 = vst [vmem:[#allocation8] sm:$0xff] %v172
      %175 = vst [vmem:[#allocation8 + $0x8] sm:$0xff] %v173
    $region33: #{tpu_custom_call.1} parent=1 // pred_fallthru
      _
    // Predicated region
    $region34: #{tpu_custom_call.1} parent=1 // pred_check
      _
    $region35: #{tpu_custom_call.1} parent=1 // pred_check_branch
      %177 = sbr.rel (0) target = $region37
    $region36: #{tpu_custom_call.1} parent=1 // pred_region
      %s179 = ssub.s32 256, 256
      %180 = vsyncadd [#allocation5], %s179
      %s181 = sshll.u32 [#allocation8], 4
      %s182 = int_to_ptr.vmem [resolvable:$true] %s181
      %187 = dma.vmem_to_hbm [thread:$0]  %s182, 256, %s4, [#allocation5], 128, 128, 8
    $region37: #{tpu_custom_call.1} parent=1 // pred_fallthru
      _
    // Predicated region
    $region38: #{tpu_custom_call.1} parent=1 // pred_check
      _
    $region39: #{tpu_custom_call.1} parent=1 // pred_check_branch
      %189 = sbr.rel (0) target = $region41
    $region40: #{tpu_custom_call.1} parent=1 // pred_region
      %190 = dma.done [#allocation5], 256
    $region41: #{tpu_custom_call.1} parent=1 // pred_fallthru
      _
    %191 = vsyncpa [#allocation4], 1
    %192 = vsyncpa [#allocation7], 1
    %193 = vsyncpa [#allocation5], 1

</llo_original>
